<compile_context>
chip_gen: v5e
topology: v5e:2x2
jax: 0.10.0
libtpu: 0.0.40
codegen_flags: <defaults>
</compile_context>

<pallas_src>
import jax
import jax.numpy as jnp
from jax.experimental import pallas as pl
from jax.experimental.pallas import tpu as pltpu

_LANE = 128                       # lane width (last-dim alignment target)
_SUBLANE = 8                      # f32 sublane height (2nd-to-last alignment)
_MAX_TM = 1024                    # max row tile (sweepable: 256 / 512 / 1024)
_VMEM_BUDGET = 40 * 1024 * 1024   # working-set target; safe inside v7x 64 MiB/TC
_VMEM_HEADROOM = 8 * 1024 * 1024


def _round_up(x: int, m: int) -> int:
    return (x + m - 1) // m * m


def _linear_relu_kernel(x_ref, w_ref, b_ref, o_ref):
    # x_ref: (tm, K)  w_ref: (K, N)  b_ref: (1, N)  o_ref: (tm, N)
    # All shapes are lane/sublane aligned by the wrapper, so the store is
    # lane-dense (unmasked vst).
    y = jnp.dot(x_ref[...], w_ref[...], preferred_element_type=jnp.float32)
    y = y + b_ref[...]                        # (1, N) broadcasts over rows
    o_ref[...] = jnp.maximum(y, 0.0).astype(o_ref.dtype)


def _working_set_bytes(tm, k_pad, n_pad, itemsize, weight_bufs):
    x = 2 * tm * k_pad * itemsize             # double-buffered activation tile
    o = 2 * tm * n_pad * itemsize             # double-buffered output tile
    w = weight_bufs * k_pad * n_pad * itemsize  # resident weight
    b = weight_bufs * n_pad * itemsize          # resident bias row
    return x + o + w + b


def _choose_tm(b_pad8, k_pad, n_pad, itemsize):
    """Largest row tile that fits the VMEM budget; keep >= 2 grid steps when
    the batch allows it so v7x's two TensorCores both get work."""
    tm = min(_MAX_TM, b_pad8)
    # Conservative sizing: assume double-buffered weight (covers the fallback).
    while tm > _SUBLANE and _working_set_bytes(
            tm, k_pad, n_pad, itemsize, 2) > _VMEM_BUDGET:
        tm = _round_up(tm // 2, _SUBLANE)
    if b_pad8 // tm < 2 and b_pad8 >= 2 * _SUBLANE:
        tm = max(_SUBLANE, _round_up(b_pad8 // 2, _SUBLANE))
    return tm


def _build_call(grid, tm, k_pad, n_pad, out_dtype, vmem_limit_bytes,
                single_buffer_resident):
    # Weight/bias block indices never change across the grid -> single buffer.
    resident_kwargs = (
        dict(pipeline_mode=pl.Buffered(1)) if single_buffer_resident else {}
    )
    return pl.pallas_call(
        _linear_relu_kernel,
        out_shape=jax.ShapeDtypeStruct((grid * tm, n_pad), out_dtype),
        grid_spec=pltpu.PrefetchScalarGridSpec(
            num_scalar_prefetch=0,
            grid=(grid,),
            in_specs=[
                pl.BlockSpec((tm, k_pad), lambda i: (i, 0)),            # rows
                pl.BlockSpec((k_pad, n_pad), lambda i: (0, 0),          # weight
                             **resident_kwargs),
                pl.BlockSpec((1, n_pad), lambda i: (0, 0),              # bias
                             **resident_kwargs),
            ],
            out_specs=pl.BlockSpec((tm, n_pad), lambda i: (i, 0)),
        ),
        compiler_params=pltpu.CompilerParams(
            dimension_semantics=("parallel",),
            vmem_limit_bytes=vmem_limit_bytes,
        ),
    )


def hidden_net_forward(feature, weight_t, bias):
    """ReLU(feature @ weight_t + bias).

    feature:  (B, K) f32
    weight_t: (K, N) f32  (PyTorch nn.Linear weight, already transposed)
    bias:     (N,)  f32
    """
    B, K = feature.shape
    K2, N = weight_t.shape
    assert K == K2, "feature / weight dim mismatch"
    assert bias.shape == (N,), "bias shape mismatch"
    itemsize = jnp.dtype(feature.dtype).itemsize

    # Lane-dense padding of the contraction and output dims.
    k_pad = _round_up(K, _LANE)
    n_pad = _round_up(N, _LANE)
    b_pad8 = _round_up(B, _SUBLANE)

    tm = _choose_tm(b_pad8, k_pad, n_pad, itemsize)
    b_pad = _round_up(b_pad8, tm)
    grid = b_pad // tm

    x = jnp.pad(feature, ((0, b_pad - B), (0, k_pad - K)))
    w = jnp.pad(weight_t, ((0, k_pad - K), (0, n_pad - N)))
    b2 = jnp.pad(bias, (0, n_pad - N)).reshape(1, n_pad)

    ws = _working_set_bytes(tm, k_pad, n_pad, itemsize, weight_bufs=2)
    vmem_limit = int(max(32 * 1024 * 1024,
                         min(ws + _VMEM_HEADROOM, _VMEM_BUDGET + _VMEM_HEADROOM)))

    try:
        out = _build_call(grid, tm, k_pad, n_pad, feature.dtype,
                          vmem_limit, single_buffer_resident=True)(x, w, b2)
    except Exception:
        # Installed Pallas rejected single-buffer pipeline_mode; fall back to
        # default double buffering (costs one extra resident weight copy).
        out = _build_call(grid, tm, k_pad, n_pad, feature.dtype,
                          vmem_limit, single_buffer_resident=False)(x, w, b2)

    return out[:B, :N]


def _reference(feature, weight_t, bias):
    return jnp.maximum(feature @ weight_t + bias[None, :], 0.0)


if __name__ == "__main__":
    key = jax.random.PRNGKey(0)
    k_x, k_w, k_b = jax.random.split(key, 3)

    # HiddenNet defaults: Linear(256, 256) + ReLU.  Batch of 50 (not a tile
    # multiple) exercises the row-padding path.
    batch, input_size, output_size = 50, 256, 256

    feature = jax.random.normal(k_x, (batch, input_size), dtype=jnp.float32)

    # Deterministic "xavier-like" init (weights_init_ in the original repo);
    # stored already transposed: (input_size, output_size).
    limit = (6.0 / (input_size + output_size)) ** 0.5
    weight_t = jax.random.uniform(
        k_w, (input_size, output_size), minval=-limit, maxval=limit,
        dtype=jnp.float32)
    bias = jax.random.uniform(
        k_b, (output_size,), minval=-0.1, maxval=0.1, dtype=jnp.float32)

    out = hidden_net_forward(feature, weight_t, bias)
    out = jax.block_until_ready(out)

    ref = _reference(feature, weight_t, bias)
    assert out.shape == (batch, output_size)
    assert jnp.allclose(out, ref, atol=1e-4, rtol=1e-4), "mismatch vs reference"

    print("KERNEL_OK")
</pallas_src>

<mosaic_0001>
module attributes {stable_mosaic.version = 11 : i64} {
  func.func @_linear_relu_kernel(%arg0: i32, %arg1: memref<32x256xf32, #tpu.memory_space<vmem>>, %arg2: memref<256x256xf32, #tpu.memory_space<vmem>>, %arg3: memref<1x256xf32, #tpu.memory_space<vmem>>, %arg4: memref<32x256xf32, #tpu.memory_space<vmem>>) attributes {dimension_semantics = [#tpu.dimension_semantics<parallel>], iteration_bounds = array<i64: 2>, scalar_prefetch = 0 : i64, scratch_operands = 0 : i64, tpu.core_type = #tpu.core_type<tc>, window_params = [{transform_indices = @transform_0, window_bounds = array<i64: 32, 256>}, {pipeline_mode = #tpu.pipeline_mode<synchronous>, transform_indices = @transform_1, window_bounds = array<i64: 256, 256>}, {pipeline_mode = #tpu.pipeline_mode<synchronous>, transform_indices = @transform_2, window_bounds = array<i64: 1, 256>}, {transform_indices = @transform_3, window_bounds = array<i64: 32, 256>}]} {
    %c0 = arith.constant 0 : index
    %c0_0 = arith.constant 0 : index
    %0 = vector.load %arg1[%c0, %c0_0] : memref<32x256xf32, #tpu.memory_space<vmem>>, vector<32x256xf32>
    %c0_1 = arith.constant 0 : index
    %c0_2 = arith.constant 0 : index
    %1 = vector.load %arg2[%c0_1, %c0_2] : memref<256x256xf32, #tpu.memory_space<vmem>>, vector<256x256xf32>
    %cst = arith.constant dense<0.000000e+00> : vector<32x256xf32>
    %2 = tpu.matmul %0, %1, %cst {dimension_numbers = #tpu.dot_dimension_numbers<[1], [0], [0], [1], [0, 0, 1, 1], [], []>} : vector<32x256xf32>, vector<256x256xf32>, vector<32x256xf32> -> vector<32x256xf32>
    %c0_3 = arith.constant 0 : index
    %c0_4 = arith.constant 0 : index
    %3 = vector.load %arg3[%c0_3, %c0_4] : memref<1x256xf32, #tpu.memory_space<vmem>>, vector<1x256xf32>
    %4 = vector.broadcast %3 : vector<1x256xf32> to vector<32x256xf32>
    %5 = arith.addf %2, %4 : vector<32x256xf32>
    %cst_5 = arith.constant 0.000000e+00 : f32
    %6 = vector.broadcast %cst_5 : f32 to vector<32x256xf32>
    %7 = arith.maximumf %5, %6 : vector<32x256xf32>
    %c0_6 = arith.constant 0 : index
    %c0_7 = arith.constant 0 : index
    %8 = vector.load %arg4[%c0_6, %c0_7] : memref<32x256xf32, #tpu.memory_space<vmem>>, vector<32x256xf32>
    tpu.vector_store %arg4[%c0_6, %c0_7], %7 {strides = array<i32>} : memref<32x256xf32, #tpu.memory_space<vmem>>, vector<32x256xf32>,
    return
  }
  func.func @transform_0(%arg0: i32) -> (i32, i32) {
    %c0_i32 = arith.constant 0 : i32
    %c0_i32_0 = arith.constant 0 : i32
    return %arg0, %c0_i32 : i32, i32
  }
  func.func @transform_1(%arg0: i32) -> (i32, i32) {
    %c0_i32 = arith.constant 0 : i32
    %c0_i32_0 = arith.constant 0 : i32
    %c0_i32_1 = arith.constant 0 : i32
    return %c0_i32, %c0_i32_0 : i32, i32
  }
  func.func @transform_2(%arg0: i32) -> (i32, i32) {
    %c0_i32 = arith.constant 0 : i32
    %c0_i32_0 = arith.constant 0 : i32
    %c0_i32_1 = arith.constant 0 : i32
    return %c0_i32, %c0_i32_0 : i32, i32
  }
  func.func @transform_3(%arg0: i32) -> (i32, i32) {
    %c0_i32 = arith.constant 0 : i32
    %c0_i32_0 = arith.constant 0 : i32
    return %arg0, %c0_i32 : i32, i32
  }
}

module attributes {stable_mosaic.version = 11 : i64} {
  func.func @_linear_relu_kernel(%arg0: i32, %arg1: memref<32x256xf32, #tpu.memory_space<vmem>>, %arg2: memref<256x256xf32, #tpu.memory_space<vmem>>, %arg3: memref<1x256xf32, #tpu.memory_space<vmem>>, %arg4: memref<32x256xf32, #tpu.memory_space<vmem>>) attributes {dimension_semantics = [#tpu.dimension_semantics<parallel>], iteration_bounds = array<i64: 2>, scalar_prefetch = 0 : i64, scratch_operands = 0 : i64, tpu.core_type = #tpu.core_type<tc>, window_params = [{transform_indices = @transform_0, window_bounds = array<i64: 32, 256>}, {pipeline_mode = #tpu.pipeline_mode<synchronous>, transform_indices = @transform_1, window_bounds = array<i64: 256, 256>}, {pipeline_mode = #tpu.pipeline_mode<synchronous>, transform_indices = @transform_2, window_bounds = array<i64: 1, 256>}, {transform_indices = @transform_3, window_bounds = array<i64: 32, 256>}]} {
    %c0 = arith.constant 0 : index
    %c0_0 = arith.constant 0 : index
    %0 = vector.load %arg1[%c0, %c0_0] : memref<32x256xf32, #tpu.memory_space<vmem>>, vector<32x256xf32>
    %c0_1 = arith.constant 0 : index
    %c0_2 = arith.constant 0 : index
    %1 = vector.load %arg2[%c0_1, %c0_2] : memref<256x256xf32, #tpu.memory_space<vmem>>, vector<256x256xf32>
    %cst = arith.constant dense<0.000000e+00> : vector<32x256xf32>
    %2 = tpu.matmul %0, %1, %cst {dimension_numbers = #tpu.dot_dimension_numbers<[1], [0], [0], [1], [0, 0, 1, 1], [], []>} : vector<32x256xf32>, vector<256x256xf32>, vector<32x256xf32> -> vector<32x256xf32>
    %c0_3 = arith.constant 0 : index
    %c0_4 = arith.constant 0 : index
    %3 = vector.load %arg3[%c0_3, %c0_4] : memref<1x256xf32, #tpu.memory_space<vmem>>, vector<1x256xf32>
    %4 = vector.broadcast %3 : vector<1x256xf32> to vector<32x256xf32>
    %5 = arith.addf %2, %4 : vector<32x256xf32>
    %cst_5 = arith.constant 0.000000e+00 : f32
    %6 = vector.broadcast %cst_5 : f32 to vector<32x256xf32>
    %7 = arith.maximumf %5, %6 : vector<32x256xf32>
    %c0_6 = arith.constant 0 : index
    %c0_7 = arith.constant 0 : index
    %8 = vector.load %arg4[%c0_6, %c0_7] : memref<32x256xf32, #tpu.memory_space<vmem>>, vector<32x256xf32>
    tpu.vector_store %arg4[%c0_6, %c0_7], %7 {strides = array<i32>} : memref<32x256xf32, #tpu.memory_space<vmem>>, vector<32x256xf32>,
    return
  }
  func.func @transform_0(%arg0: i32) -> (i32, i32) {
    %c0_i32 = arith.constant 0 : i32
    %c0_i32_0 = arith.constant 0 : i32
    return %arg0, %c0_i32 : i32, i32
  }
  func.func @transform_1(%arg0: i32) -> (i32, i32) {
    %c0_i32 = arith.constant 0 : i32
    %c0_i32_0 = arith.constant 0 : i32
    %c0_i32_1 = arith.constant 0 : i32
    return %c0_i32, %c0_i32_0 : i32, i32
  }
  func.func @transform_2(%arg0: i32) -> (i32, i32) {
    %c0_i32 = arith.constant 0 : i32
    %c0_i32_0 = arith.constant 0 : i32
    %c0_i32_1 = arith.constant 0 : i32
    return %c0_i32, %c0_i32_0 : i32, i32
  }
  func.func @transform_3(%arg0: i32) -> (i32, i32) {
    %c0_i32 = arith.constant 0 : i32
    %c0_i32_0 = arith.constant 0 : i32
    return %arg0, %c0_i32 : i32, i32
  }
}

</mosaic_0001>

<llo_original>
// kernel: tpu_custom_call.1
$region0: #{tpu_custom_call.1}
  #allocation0 [shape = 'u32[]', space=smem, size = 0x4, offset = 0x4, fixed_abs, tag = 'smem constant byte address 0x4 - core index']
  #allocation1 [shape = 'u32[72,128]{1,0:T(1,128)}', space=vmem, size = 0x9000, scoped, tag = 'internal scratch']
  %s0 = inlined_call_operand.hbm [shape: f32[64,256], index: 0, kind: input, shape index: {}]
  %s1 = inlined_call_operand.hbm [shape: f32[256,256], index: 1, kind: input, shape index: {}]
  %s2 = inlined_call_operand.hbm [shape: f32[1,256], index: 2, kind: input, shape index: {}]
  %s3 = inlined_call_operand.hbm [shape: f32[64,256], index: 3, kind: output, shape index: {}]
  %s4 = sld [smem:[#allocation0]]
  $region57: #{tpu_custom_call.1} parent=0
    _
  %s6 = ssub.s32 1, %s4
  %s7 = scalar_select 0, %s6, %s4
  $region1: #{tpu_custom_call.1} parent=0
    #allocation2 [shape = 'u8[65536]{0}', space=vmem, size = 0x10000, scoped, tag = 'input window, operand 0']
    #allocation3 [shape = 's32[2]{0}', space=sflag, size = 0x8, scoped, tag = 'scoped memory for tpu_custom_call.1']
    #allocation4 [shape = 's32[2]{0}', space=sflag, size = 0x8, scoped, tag = 'scoped memory for tpu_custom_call.1']
    #allocation5 [shape = 'u8[262144]{0}', space=vmem, size = 0x40000, scoped, tag = 'input window, operand 1, single buffered']
    #allocation6 [shape = 's32[1]{0}', space=sflag, size = 0x4, scoped, tag = 'scoped memory for tpu_custom_call.1']
    #allocation7 [shape = 'u8[1024]{0}', space=vmem, size = 0x400, scoped, tag = 'input window, operand 2, single buffered']
    #allocation8 [shape = 'u8[65536]{0}', space=vmem, size = 0x10000, scoped, tag = 'output window, operand 0']
    %8 = vsyncpa [#allocation3], 0
    %s9 = scalar_lea.sflag [#allocation3], 1
    %10 = vsyncpa %s9, 0
    %11 = vsyncpa [#allocation6], 0
    %12 = vsyncpa [#allocation4], 0
    %s13 = scalar_lea.sflag [#allocation4], 1
    %14 = vsyncpa %s13, 0
    loop: start=0, step=1, limit=4
    $region2: #{tpu_custom_call.1} parent=1 // loop_pre_header
      _
    $region3: #{tpu_custom_call.1} parent=1 // loop_header
      %s16 = sphi 0, %s20
      %p17 = scmp.ge.s32.totalorder %s16, 4
      %s26 = sphi 0, %s28
      %s29 = sphi 0, %s26
      %s30 = sphi 0, %s29
      %s46 = sphi 0, %s30
      %s50 = sphi 0, %s50
      %s52 = sphi 0, %s50
      %s53 = sphi 0, %s52
      %s67 = sphi 0, %s53
      %s71 = sphi 0, %s71
      %s73 = sphi 0, %s71
      %s74 = sphi 0, %s73
      %s88 = sphi 0, %s74
      %s94 = sphi 0, %s96
      %s97 = sphi 0, %s94
      %s98 = sphi 0, %s97
      %s114 = sphi 0, %s98
    $region4: #{tpu_custom_call.1} parent=1 // loop_header_branch
      %19 = sbr.rel (%p17) target = $region8
    $region5: #{tpu_custom_call.1} parent=1 // loop_body
      %s21 = ssub.s32 %s16, 1
      %s22 = ssub.s32 %s16, 2
      %s23 = sadd.s32 %s16, 1
      %s24 = ssub.s32 %s16, %s23
      %p25 = scmp.eq.s32.totalorder %s24, 0
      %s27 = sadd.s32 %s26, 1
      %s28 = scalar_select %p25, %s26, %s27
      %p31 = pneg %p25
      %p32 = scmp.eq.s32.totalorder %s16, 1
      %p33 = por %p31, %p32
      %p34 = scmp.ne.s32.totalorder %s26, %s29
      %p35 = scmp.eq.s32.totalorder %s16, 0
      %p36 = por %p34, %p35
      %p37 = scmp.ne.s32.totalorder %s26, %s29
      %p38 = scmp.eq.s32.totalorder %s21, 1
      %p39 = por %p37, %p38
      %p40 = scmp.ne.s32.totalorder %s29, %s30
      %p41 = scmp.eq.s32.totalorder %s21, 0
      %p42 = por %p40, %p41
      %p43 = scmp.ne.s32.totalorder %s29, %s30
      %p44 = scmp.eq.s32.totalorder %s22, 1
      %p45 = por %p43, %p44
      %p47 = scmp.ne.s32.totalorder %s30, %s46
      %p48 = scmp.eq.s32.totalorder %s22, 0
      %p49 = por %p47, %p48
      %s51 = sadd.s32 %s50, 1
      %p54 = scmp.eq.s32.totalorder %s16, 1
      %p55 = scmp.ne.s32.totalorder %s50, %s52
      %p56 = scmp.eq.s32.totalorder %s16, 0
      %p57 = por %p55, %p56
      %p58 = scmp.ne.s32.totalorder %s50, %s52
      %p59 = scmp.eq.s32.totalorder %s21, 1
      %p60 = por %p58, %p59
      %p61 = scmp.ne.s32.totalorder %s52, %s53
      %p62 = scmp.eq.s32.totalorder %s21, 0
      %p63 = por %p61, %p62
      %p64 = scmp.ne.s32.totalorder %s52, %s53
      %p65 = scmp.eq.s32.totalorder %s22, 1
      %p66 = por %p64, %p65
      %p68 = scmp.ne.s32.totalorder %s53, %s67
      %p69 = scmp.eq.s32.totalorder %s22, 0
      %p70 = por %p68, %p69
      %s72 = sadd.s32 %s71, 1
      %p75 = scmp.eq.s32.totalorder %s16, 1
      %p76 = scmp.ne.s32.totalorder %s71, %s73
      %p77 = scmp.eq.s32.totalorder %s16, 0
      %p78 = por %p76, %p77
      %p79 = scmp.ne.s32.totalorder %s71, %s73
      %p80 = scmp.eq.s32.totalorder %s21, 1
      %p81 = por %p79, %p80
      %p82 = scmp.ne.s32.totalorder %s73, %s74
      %p83 = scmp.eq.s32.totalorder %s21, 0
      %p84 = por %p82, %p83
      %p85 = scmp.ne.s32.totalorder %s73, %s74
      %p86 = scmp.eq.s32.totalorder %s22, 1
      %p87 = por %p85, %p86
      %p89 = scmp.ne.s32.totalorder %s74, %s88
      %p90 = scmp.eq.s32.totalorder %s22, 0
      %p91 = por %p89, %p90
      %s92 = ssub.s32 %s16, %s23
      %p93 = scmp.eq.s32.totalorder %s92, 0
      %s95 = sadd.s32 %s94, 1
      %s96 = scalar_select %p93, %s94, %s95
      %p99 = pneg %p93
      %p100 = scmp.eq.s32.totalorder %s16, 1
      %p101 = por %p99, %p100
      %p102 = scmp.ne.s32.totalorder %s94, %s97
      %p103 = scmp.eq.s32.totalorder %s16, 0
      %p104 = por %p102, %p103
      %p105 = scmp.ne.s32.totalorder %s94, %s97
      %p106 = scmp.eq.s32.totalorder %s21, 1
      %p107 = por %p105, %p106
      %p108 = scmp.ne.s32.totalorder %s97, %s98
      %p109 = scmp.eq.s32.totalorder %s21, 0
      %p110 = por %p108, %p109
      %p111 = scmp.ne.s32.totalorder %s97, %s98
      %p112 = scmp.eq.s32.totalorder %s22, 1
      %p113 = por %p111, %p112
      %p115 = scmp.ne.s32.totalorder %s98, %s114
      %p116 = scmp.eq.s32.totalorder %s22, 0
      %p117 = por %p115, %p116
      %p118 = scmp.le.s32.totalorder 1, %s16
      %p119 = scmp.lt.s32.totalorder %s16, 3
      %p120 = pnand %p118, %p119
      %p121 = pneg %p120
      // Predicated region
      $region9: #{tpu_custom_call.1} parent=5 // pred_check
        _
      $region10: #{tpu_custom_call.1} parent=5 // pred_check_branch
        %123 = sbr.rel (%p120) target = $region12
      $region11: #{tpu_custom_call.1} parent=5 // pred_region
        %s124 = ssub.s32 %s16, 1
        // Predicated region
        $region13: #{tpu_custom_call.1} parent=11 // pred_check
          %p125 = pneg %p63
        $region14: #{tpu_custom_call.1} parent=11 // pred_check_branch
          %127 = sbr.rel (%p125) target = $region16
        $region15: #{tpu_custom_call.1} parent=11 // pred_region
          %129 = vsyncadd [#allocation6], 0
          %s130 = sshll.u32 %s1, 4
          %s131 = int_to_ptr.hbm [resolvable:$true] %s130
          %s132 = sshll.u32 [#allocation5], 4
          %s133 = int_to_ptr.vmem [resolvable:$true] %s132
          %138 = dma.hbm_to_vmem [thread:$0]  %s131, 8192, %s133, [#allocation6], 256, 256, 16
        $region16: #{tpu_custom_call.1} parent=11 // pred_fallthru
          _
        // Predicated region
        $region17: #{tpu_custom_call.1} parent=11 // pred_check
          %p139 = pneg %p84
        $region18: #{tpu_custom_call.1} parent=11 // pred_check_branch
          %141 = sbr.rel (%p139) target = $region20
        $region19: #{tpu_custom_call.1} parent=11 // pred_region
          %143 = vsyncadd [#allocation6], 0
          %s145 = sshll.u32 %s2, 4
          %s146 = int_to_ptr.hbm [resolvable:$true] %s145
          %s147 = sshll.u32 [#allocation7], 4
          %s148 = int_to_ptr.vmem [resolvable:$true] %s147
          %150 = dma.hbm_to_vmem [thread:$0]  %s146, 32, %s148, [#allocation6]
        $region20: #{tpu_custom_call.1} parent=11 // pred_fallthru
          _
      $region12: #{tpu_custom_call.1} parent=5 // pred_fallthru
        _
      %p151 = scmp.lt.s32.totalorder %s16, 2
      // Predicated region
      $region21: #{tpu_custom_call.1} parent=5 // pred_check
        %p152 = pneg %p151
      $region22: #{tpu_custom_call.1} parent=5 // pred_check_branch
        %154 = sbr.rel (%p152) target = $region24
      $region23: #{tpu_custom_call.1} parent=5 // pred_region
        // Predicated region
        $region25: #{tpu_custom_call.1} parent=23 // pred_check
          %p155 = pneg %p36
        $region26: #{tpu_custom_call.1} parent=23 // pred_check_branch
          %157 = sbr.rel (%p155) target = $region28
        $region27: #{tpu_custom_call.1} parent=23 // pred_region
          %s158 = sand.u32 %s26, 1
          %s159 = scalar_lea.sflag [#allocation3], %s158
          %s160 = sand.u32 %s26, 1
          %s161 = smul.addr %s160, 64
          %s162 = scalar_lea.vmem [#allocation2], %s161
          %s163 = smul.u32 4, %s16
          %165 = vsyncadd %s159, 0
          %s166 = smul.addr %s163, 2
          %s167 = smul.addr %s166, 8
          %s168 = scalar_lea.hbm %s0, %s167
          %s169 = sshll.u32 %s168, 4
          %s170 = int_to_ptr.hbm [resolvable:$true] %s169
          %s171 = sshll.u32 %s162, 4
          %s172 = int_to_ptr.vmem [resolvable:$true] %s171
          %177 = dma.hbm_to_vmem [thread:$0]  %s170, 1024, %s172, %s159, 256, 256, 16
        $region28: #{tpu_custom_call.1} parent=23 // pred_fallthru
          _
      $region24: #{tpu_custom_call.1} parent=5 // pred_fallthru
        _
      %p178 = scmp.le.s32.totalorder 1, %s16
      %p179 = scmp.lt.s32.totalorder %s16, 3
      %p180 = pnand %p178, %p179
      %p181 = pneg %p180
      // Predicated region
      $region29: #{tpu_custom_call.1} parent=5 // pred_check
        _
      $region30: #{tpu_custom_call.1} parent=5 // pred_check_branch
        %183 = sbr.rel (%p180) target = $region32
      $region31: #{tpu_custom_call.1} parent=5 // pred_region
        %s184 = ssub.s32 %s16, 1
        %s185 = sand.u32 %s29, 1
        %s186 = scalar_lea.sflag [#allocation3], %s185
        %s187 = sand.u32 %s29, 1
        %s188 = smul.addr %s187, 64
        %s189 = scalar_lea.vmem [#allocation2], %s188
        // Predicated region
        $region33: #{tpu_custom_call.1} parent=31 // pred_check
          %p190 = pneg %p42
        $region34: #{tpu_custom_call.1} parent=31 // pred_check_branch
          %192 = sbr.rel (%p190) target = $region36
        $region35: #{tpu_custom_call.1} parent=31 // pred_region
          %194 = dma.done %s186, 1024
        $region36: #{tpu_custom_call.1} parent=31 // pred_fallthru
          _
        // Predicated region
        $region37: #{tpu_custom_call.1} parent=31 // pred_check
          %p195 = pneg %p63
        $region38: #{tpu_custom_call.1} parent=31 // pred_check_branch
          %197 = sbr.rel (%p195) target = $region40
        $region39: #{tpu_custom_call.1} parent=31 // pred_region
          %199 = dma.done [#allocation6], 8192
        $region40: #{tpu_custom_call.1} parent=31 // pred_fallthru
          _
        // Predicated region
        $region41: #{tpu_custom_call.1} parent=31 // pred_check
          %p200 = pneg %p84
        $region42: #{tpu_custom_call.1} parent=31 // pred_check_branch
          %202 = sbr.rel (%p200) target = $region44
        $region43: #{tpu_custom_call.1} parent=31 // pred_region
          %204 = dma.done [#allocation6], 32
        $region44: #{tpu_custom_call.1} parent=31 // pred_fallthru
          _
        %s205 = sand.u32 %s29, 1
        %s206 = scalar_lea.sflag [#allocation3], %s205
        %s207 = sand.u32 %s29, 1
        %s208 = smul.addr %s207, 64
        %s209 = scalar_lea.vmem [#allocation2], %s208
        %p210 = pneg %p42
        %p211 = pneg %p39
        %p212 = pneg %p63
        %p213 = pneg %p60
        %p214 = pneg %p84
        %p215 = pneg %p81
        %p216 = pneg %p110
        %p217 = pneg %p107
        %s218 = sand.u32 %s97, 1
        %s219 = scalar_lea.sflag [#allocation4], %s218
        %s220 = sand.u32 %s97, 1
        %s221 = smul.addr %s220, 64
        %s222 = scalar_lea.vmem [#allocation8], %s221
        %s223 = smul.u32 4, %s21
        %s224 = smul.u32 4, %s21
        %v225 = vld [vmem:[%s189] sm:$0xff]
        %v226 = vld [vmem:[%s189 + $0x8] sm:$0xff]
        %v227 = vld [vmem:[%s189 + $0x10] sm:$0xff]
        %v228 = vld [vmem:[%s189 + $0x18] sm:$0xff]
        %v229 = vld [vmem:[%s189 + $0x20] sm:$0xff]
        %v230 = vld [vmem:[%s189 + $0x28] sm:$0xff]
        %v231 = vld [vmem:[%s189 + $0x30] sm:$0xff]
        %v232 = vld [vmem:[%s189 + $0x38] sm:$0xff]
        %v233 = vld [vmem:[#allocation5] sm:$0xff]
        %v234 = vld [vmem:[#allocation5 + $0x8] sm:$0xff]
        %v235 = vld [vmem:[#allocation5 + $0x10] sm:$0xff]
        %v236 = vld [vmem:[#allocation5 + $0x18] sm:$0xff]
        %v237 = vld [vmem:[#allocation5 + $0x20] sm:$0xff]
        %v238 = vld [vmem:[#allocation5 + $0x28] sm:$0xff]
        %v239 = vld [vmem:[#allocation5 + $0x30] sm:$0xff]
        %v240 = vld [vmem:[#allocation5 + $0x38] sm:$0xff]
        %v241 = vld [vmem:[#allocation5 + $0x40] sm:$0xff]
        %v242 = vld [vmem:[#allocation5 + $0x48] sm:$0xff]
        %v243 = vld [vmem:[#allocation5 + $0x50] sm:$0xff]
        %v244 = vld [vmem:[#allocation5 + $0x58] sm:$0xff]
        %v245 = vld [vmem:[#allocation5 + $0x60] sm:$0xff]
        %v246 = vld [vmem:[#allocation5 + $0x68] sm:$0xff]
        %v247 = vld [vmem:[#allocation5 + $0x70] sm:$0xff]
        %v248 = vld [vmem:[#allocation5 + $0x78] sm:$0xff]
        %v249 = vld [vmem:[#allocation5 + $0x80] sm:$0xff]
        %v250 = vld [vmem:[#allocation5 + $0x88] sm:$0xff]
        %v251 = vld [vmem:[#allocation5 + $0x90] sm:$0xff]
        %v252 = vld [vmem:[#allocation5 + $0x98] sm:$0xff]
        %v253 = vld [vmem:[#allocation5 + $0xa0] sm:$0xff]
        %v254 = vld [vmem:[#allocation5 + $0xa8] sm:$0xff]
        %v255 = vld [vmem:[#allocation5 + $0xb0] sm:$0xff]
        %v256 = vld [vmem:[#allocation5 + $0xb8] sm:$0xff]
        %v257 = vld [vmem:[#allocation5 + $0xc0] sm:$0xff]
        %v258 = vld [vmem:[#allocation5 + $0xc8] sm:$0xff]
        %v259 = vld [vmem:[#allocation5 + $0xd0] sm:$0xff]
        %v260 = vld [vmem:[#allocation5 + $0xd8] sm:$0xff]
        %v261 = vld [vmem:[#allocation5 + $0xe0] sm:$0xff]
        %v262 = vld [vmem:[#allocation5 + $0xe8] sm:$0xff]
        %v263 = vld [vmem:[#allocation5 + $0xf0] sm:$0xff]
        %v264 = vld [vmem:[#allocation5 + $0xf8] sm:$0xff]
        %v265 = vld [vmem:[#allocation5 + $0x100] sm:$0xff]
        %v266 = vld [vmem:[#allocation5 + $0x108] sm:$0xff]
        %v267 = vld [vmem:[#allocation5 + $0x110] sm:$0xff]
        %v268 = vld [vmem:[#allocation5 + $0x118] sm:$0xff]
        %v269 = vld [vmem:[#allocation5 + $0x120] sm:$0xff]
        %v270 = vld [vmem:[#allocation5 + $0x128] sm:$0xff]
        %v271 = vld [vmem:[#allocation5 + $0x130] sm:$0xff]
        %v272 = vld [vmem:[#allocation5 + $0x138] sm:$0xff]
        %v273 = vld [vmem:[#allocation5 + $0x140] sm:$0xff]
        %v274 = vld [vmem:[#allocation5 + $0x148] sm:$0xff]
        %v275 = vld [vmem:[#allocation5 + $0x150] sm:$0xff]
        %v276 = vld [vmem:[#allocation5 + $0x158] sm:$0xff]
        %v277 = vld [vmem:[#allocation5 + $0x160] sm:$0xff]
        %v278 = vld [vmem:[#allocation5 + $0x168] sm:$0xff]
        %v279 = vld [vmem:[#allocation5 + $0x170] sm:$0xff]
        %v280 = vld [vmem:[#allocation5 + $0x178] sm:$0xff]
        %v281 = vld [vmem:[#allocation5 + $0x180] sm:$0xff]
        %v282 = vld [vmem:[#allocation5 + $0x188] sm:$0xff]
        %v283 = vld [vmem:[#allocation5 + $0x190] sm:$0xff]
        %v284 = vld [vmem:[#allocation5 + $0x198] sm:$0xff]
        %v285 = vld [vmem:[#allocation5 + $0x1a0] sm:$0xff]
        %v286 = vld [vmem:[#allocation5 + $0x1a8] sm:$0xff]
        %v287 = vld [vmem:[#allocation5 + $0x1b0] sm:$0xff]
        %v288 = vld [vmem:[#allocation5 + $0x1b8] sm:$0xff]
        %v289 = vld [vmem:[#allocation5 + $0x1c0] sm:$0xff]
        %v290 = vld [vmem:[#allocation5 + $0x1c8] sm:$0xff]
        %v291 = vld [vmem:[#allocation5 + $0x1d0] sm:$0xff]
        %v292 = vld [vmem:[#allocation5 + $0x1d8] sm:$0xff]
        %v293 = vld [vmem:[#allocation5 + $0x1e0] sm:$0xff]
        %v294 = vld [vmem:[#allocation5 + $0x1e8] sm:$0xff]
        %v295 = vld [vmem:[#allocation5 + $0x1f0] sm:$0xff]
        %v296 = vld [vmem:[#allocation5 + $0x1f8] sm:$0xff]
        %v297 = vld [vmem:[#allocation7] sm:$0x3]
        %v299 = vperm.slane %v297, 0
        %v300 = vperm.slane %v297, 1
        %303 = vmatpush.msra.mxu0 %v263
        %304 = vmatpush.msra.mxu0 %v261
        %305 = vmatpush.msra.mxu0 %v259
        %306 = vmatpush.msra.mxu0 %v257
        %307 = vmatpush.msra.mxu0 %v255
        %308 = vmatpush.msra.mxu0 %v253
        %309 = vmatpush.msra.mxu0 %v251
        %310 = vmatpush.msra.mxu0 %v249
        %311 = vmatpush.msra.mxu0 %v247
        %312 = vmatpush.msra.mxu0 %v245
        %313 = vmatpush.msra.mxu0 %v243
        %314 = vmatpush.msra.mxu0 %v241
        %315 = vmatpush.msra.mxu0 %v239
        %316 = vmatpush.msra.mxu0 %v237
        %317 = vmatpush.msra.mxu0 %v235
        %318 = vmatpush.msra.mxu0 %v233
        %319 = vmatmul.f32.gmra.mxu0 %v225
        %v320 = vpop.f32.mrf.mxu0
        %v321 = vadd.f32 %v299, %v320
        %322 = vmatmul.f32.gmra.mxu0 %v227
        %v323 = vpop.f32.mrf.mxu0
        %v324 = vadd.f32 %v299, %v323
        %325 = vmatmul.f32.gmra.mxu0 %v229
        %v326 = vpop.f32.mrf.mxu0
        %v327 = vadd.f32 %v299, %v326
        %328 = vmatmul.f32.gmra.mxu0 %v231
        %v329 = vpop.f32.mrf.mxu0
        %v330 = vadd.f32 %v299, %v329
        %331 = vdwg.mxu0
        %332 = vmatpush.msra.mxu0 %v295
        %333 = vmatpush.msra.mxu0 %v293
        %334 = vmatpush.msra.mxu0 %v291
        %335 = vmatpush.msra.mxu0 %v289
        %336 = vmatpush.msra.mxu0 %v287
        %337 = vmatpush.msra.mxu0 %v285
        %338 = vmatpush.msra.mxu0 %v283
        %339 = vmatpush.msra.mxu0 %v281
        %340 = vmatpush.msra.mxu0 %v279
        %341 = vmatpush.msra.mxu0 %v277
        %342 = vmatpush.msra.mxu0 %v275
        %343 = vmatpush.msra.mxu0 %v273
        %344 = vmatpush.msra.mxu0 %v271
        %345 = vmatpush.msra.mxu0 %v269
        %346 = vmatpush.msra.mxu0 %v267
        %347 = vmatpush.msra.mxu0 %v265
        %348 = vmatmul.f32.gmra.mxu0 %v226
        %v349 = vpop.f32.mrf.mxu0
        %v350 = vadd.f32 %v321, %v349
        %351 = vmatmul.f32.gmra.mxu0 %v228
        %v352 = vpop.f32.mrf.mxu0
        %v353 = vadd.f32 %v324, %v352
        %354 = vmatmul.f32.gmra.mxu0 %v230
        %v355 = vpop.f32.mrf.mxu0
        %v356 = vadd.f32 %v327, %v355
        %357 = vmatmul.f32.gmra.mxu0 %v232
        %v358 = vpop.f32.mrf.mxu0
        %v359 = vadd.f32 %v330, %v358
        %360 = vdwg.mxu0
        %361 = vmatpush.msra.mxu0 %v264
        %362 = vmatpush.msra.mxu0 %v262
        %363 = vmatpush.msra.mxu0 %v260
        %364 = vmatpush.msra.mxu0 %v258
        %365 = vmatpush.msra.mxu0 %v256
        %366 = vmatpush.msra.mxu0 %v254
        %367 = vmatpush.msra.mxu0 %v252
        %368 = vmatpush.msra.mxu0 %v250
        %369 = vmatpush.msra.mxu0 %v248
        %370 = vmatpush.msra.mxu0 %v246
        %371 = vmatpush.msra.mxu0 %v244
        %372 = vmatpush.msra.mxu0 %v242
        %373 = vmatpush.msra.mxu0 %v240
        %374 = vmatpush.msra.mxu0 %v238
        %375 = vmatpush.msra.mxu0 %v236
        %376 = vmatpush.msra.mxu0 %v234
        %377 = vmatmul.f32.gmra.mxu0 %v225
        %v378 = vpop.f32.mrf.mxu0
        %v379 = vadd.f32 %v300, %v378
        %380 = vmatmul.f32.gmra.mxu0 %v227
        %v381 = vpop.f32.mrf.mxu0
        %v382 = vadd.f32 %v300, %v381
        %383 = vmatmul.f32.gmra.mxu0 %v229
        %v384 = vpop.f32.mrf.mxu0
        %v385 = vadd.f32 %v300, %v384
        %386 = vmatmul.f32.gmra.mxu0 %v231
        %v387 = vpop.f32.mrf.mxu0
        %v388 = vadd.f32 %v300, %v387
        %389 = vdwg.mxu0
        %390 = vmatpush.msra.mxu0 %v296
        %391 = vmatpush.msra.mxu0 %v294
        %392 = vmatpush.msra.mxu0 %v292
        %393 = vmatpush.msra.mxu0 %v290
        %394 = vmatpush.msra.mxu0 %v288
        %395 = vmatpush.msra.mxu0 %v286
        %396 = vmatpush.msra.mxu0 %v284
        %397 = vmatpush.msra.mxu0 %v282
        %398 = vmatpush.msra.mxu0 %v280
        %399 = vmatpush.msra.mxu0 %v278
        %400 = vmatpush.msra.mxu0 %v276
        %401 = vmatpush.msra.mxu0 %v274
        %402 = vmatpush.msra.mxu0 %v272
        %403 = vmatpush.msra.mxu0 %v270
        %404 = vmatpush.msra.mxu0 %v268
        %405 = vmatpush.msra.mxu0 %v266
        %406 = vmatmul.f32.gmra.mxu0 %v226
        %v407 = vpop.f32.mrf.mxu0
        %v408 = vadd.f32 %v379, %v407
        %409 = vmatmul.f32.gmra.mxu0 %v228
        %v410 = vpop.f32.mrf.mxu0
        %v411 = vadd.f32 %v382, %v410
        %412 = vmatmul.f32.gmra.mxu0 %v230
        %v413 = vpop.f32.mrf.mxu0
        %v414 = vadd.f32 %v385, %v413
        %415 = vmatmul.f32.gmra.mxu0 %v232
        %v416 = vpop.f32.mrf.mxu0
        %v417 = vadd.f32 %v388, %v416
        %418 = vdwg.mxu0
        %v419 = vmax.f32 %v350, 0.0
        %v420 = vmax.f32 %v408, 0.0
        %v421 = vmax.f32 %v353, 0.0
        %v422 = vmax.f32 %v411, 0.0
        %v423 = vmax.f32 %v356, 0.0
        %v424 = vmax.f32 %v414, 0.0
        %v425 = vmax.f32 %v359, 0.0
        %v426 = vmax.f32 %v417, 0.0
        %427 = vst [vmem:[%s222] sm:$0xff] %v419
        %428 = vst [vmem:[%s222 + $0x8] sm:$0xff] %v420
        %429 = vst [vmem:[%s222 + $0x10] sm:$0xff] %v421
        %430 = vst [vmem:[%s222 + $0x18] sm:$0xff] %v422
        %431 = vst [vmem:[%s222 + $0x20] sm:$0xff] %v423
        %432 = vst [vmem:[%s222 + $0x28] sm:$0xff] %v424
        %433 = vst [vmem:[%s222 + $0x30] sm:$0xff] %v425
        %434 = vst [vmem:[%s222 + $0x38] sm:$0xff] %v426
        %s435 = sand.u32 %s97, 1
        %s436 = scalar_lea.sflag [#allocation4], %s435
        %s437 = sand.u32 %s97, 1
        %s438 = smul.addr %s437, 64
        %s439 = scalar_lea.vmem [#allocation8], %s438
        // Predicated region
        $region45: #{tpu_custom_call.1} parent=31 // pred_check
          %p440 = pneg %p107
        $region46: #{tpu_custom_call.1} parent=31 // pred_check_branch
          %442 = sbr.rel (%p440) target = $region48
        $region47: #{tpu_custom_call.1} parent=31 // pred_region
          %s443 = smul.u32 4, %s21
          %445 = vsyncadd %s436, 0
          %s446 = smul.addr %s443, 2
          %s447 = smul.addr %s446, 8
          %s448 = scalar_lea.hbm %s3, %s447
          %s449 = sshll.u32 %s439, 4
          %s450 = int_to_ptr.vmem [resolvable:$true] %s449
          %s451 = sshll.u32 %s448, 4
          %s452 = int_to_ptr.hbm [resolvable:$true] %s451
          %457 = dma.vmem_to_hbm [thread:$0]  %s450, 1024, %s452, %s436, 256, 256, 16
        $region48: #{tpu_custom_call.1} parent=31 // pred_fallthru
          _
      $region32: #{tpu_custom_call.1} parent=5 // pred_fallthru
        _
      %p458 = scmp.le.s32.totalorder 2, %s16
      // Predicated region
      $region49: #{tpu_custom_call.1} parent=5 // pred_check
        %p459 = pneg %p458
      $region50: #{tpu_custom_call.1} parent=5 // pred_check_branch
        %461 = sbr.rel (%p459) target = $region52
      $region51: #{tpu_custom_call.1} parent=5 // pred_region
        %s462 = ssub.s32 %s16, 2
        // Predicated region
        $region53: #{tpu_custom_call.1} parent=51 // pred_check
          %p463 = pneg %p113
        $region54: #{tpu_custom_call.1} parent=51 // pred_check_branch
          %465 = sbr.rel (%p463) target = $region56
        $region55: #{tpu_custom_call.1} parent=51 // pred_region
          %s466 = sand.u32 %s98, 1
          %s467 = scalar_lea.sflag [#allocation4], %s466
          %s468 = sand.u32 %s98, 1
          %s469 = smul.addr %s468, 64
          %s470 = scalar_lea.vmem [#allocation8], %s469
          %472 = dma.done %s467, 1024
        $region56: #{tpu_custom_call.1} parent=51 // pred_fallthru
          _
      $region52: #{tpu_custom_call.1} parent=5 // pred_fallthru
        _
    $region6: #{tpu_custom_call.1} parent=1 // loop_footer
      %s20 = sadd.s32 1, %s16
    $region7: #{tpu_custom_call.1} parent=1 // loop_footer_branch
      %15 = sbr.rel target = $region3
    $region8: #{tpu_custom_call.1} parent=1 // loop_exit
      _
    %473 = vsyncpa [#allocation3], 1
    %s474 = scalar_lea.sflag [#allocation3], 1
    %475 = vsyncpa %s474, 1
    %476 = vsyncpa [#allocation6], 1
    %477 = vsyncpa [#allocation4], 1
    %s478 = scalar_lea.sflag [#allocation4], 1
    %479 = vsyncpa %s478, 1

// kernel: tpu_custom_call.1
$region0: #{tpu_custom_call.1}
  #allocation0 [shape = 'u32[]', space=smem, size = 0x4, offset = 0x4, fixed_abs, tag = 'smem constant byte address 0x4 - core index']
  #allocation1 [shape = 'u32[72,128]{1,0:T(1,128)}', space=vmem, size = 0x9000, scoped, tag = 'internal scratch']
  %s0 = inlined_call_operand.hbm [shape: f32[64,256], index: 0, kind: input, shape index: {}]
  %s1 = inlined_call_operand.hbm [shape: f32[256,256], index: 1, kind: input, shape index: {}]
  %s2 = inlined_call_operand.hbm [shape: f32[1,256], index: 2, kind: input, shape index: {}]
  %s3 = inlined_call_operand.hbm [shape: f32[64,256], index: 3, kind: output, shape index: {}]
  %s4 = sld [smem:[#allocation0]]
  $region57: #{tpu_custom_call.1} parent=0
    _
  %s6 = ssub.s32 1, %s4
  %s7 = scalar_select 0, %s6, %s4
  $region1: #{tpu_custom_call.1} parent=0
    #allocation2 [shape = 'u8[65536]{0}', space=vmem, size = 0x10000, scoped, tag = 'input window, operand 0']
    #allocation3 [shape = 's32[2]{0}', space=sflag, size = 0x8, scoped, tag = 'scoped memory for tpu_custom_call.1']
    #allocation4 [shape = 's32[2]{0}', space=sflag, size = 0x8, scoped, tag = 'scoped memory for tpu_custom_call.1']
    #allocation5 [shape = 'u8[262144]{0}', space=vmem, size = 0x40000, scoped, tag = 'input window, operand 1, single buffered']
    #allocation6 [shape = 's32[1]{0}', space=sflag, size = 0x4, scoped, tag = 'scoped memory for tpu_custom_call.1']
    #allocation7 [shape = 'u8[1024]{0}', space=vmem, size = 0x400, scoped, tag = 'input window, operand 2, single buffered']
    #allocation8 [shape = 'u8[65536]{0}', space=vmem, size = 0x10000, scoped, tag = 'output window, operand 0']
    %8 = vsyncpa [#allocation3], 0
    %s9 = scalar_lea.sflag [#allocation3], 1
    %10 = vsyncpa %s9, 0
    %11 = vsyncpa [#allocation6], 0
    %12 = vsyncpa [#allocation4], 0
    %s13 = scalar_lea.sflag [#allocation4], 1
    %14 = vsyncpa %s13, 0
    loop: start=0, step=1, limit=4
    $region2: #{tpu_custom_call.1} parent=1 // loop_pre_header
      _
    $region3: #{tpu_custom_call.1} parent=1 // loop_header
      %s16 = sphi 0, %s20
      %p17 = scmp.ge.s32.totalorder %s16, 4
      %s26 = sphi 0, %s28
      %s29 = sphi 0, %s26
      %s30 = sphi 0, %s29
      %s46 = sphi 0, %s30
      %s50 = sphi 0, %s50
      %s52 = sphi 0, %s50
      %s53 = sphi 0, %s52
      %s67 = sphi 0, %s53
      %s71 = sphi 0, %s71
      %s73 = sphi 0, %s71
      %s74 = sphi 0, %s73
      %s88 = sphi 0, %s74
      %s94 = sphi 0, %s96
      %s97 = sphi 0, %s94
      %s98 = sphi 0, %s97
      %s114 = sphi 0, %s98
    $region4: #{tpu_custom_call.1} parent=1 // loop_header_branch
      %19 = sbr.rel (%p17) target = $region8
    $region5: #{tpu_custom_call.1} parent=1 // loop_body
      %s21 = ssub.s32 %s16, 1
      %s22 = ssub.s32 %s16, 2
      %s23 = sadd.s32 %s16, 1
      %s24 = ssub.s32 %s16, %s23
      %p25 = scmp.eq.s32.totalorder %s24, 0
      %s27 = sadd.s32 %s26, 1
      %s28 = scalar_select %p25, %s26, %s27
      %p31 = pneg %p25
      %p32 = scmp.eq.s32.totalorder %s16, 1
      %p33 = por %p31, %p32
      %p34 = scmp.ne.s32.totalorder %s26, %s29
      %p35 = scmp.eq.s32.totalorder %s16, 0
      %p36 = por %p34, %p35
      %p37 = scmp.ne.s32.totalorder %s26, %s29
      %p38 = scmp.eq.s32.totalorder %s21, 1
      %p39 = por %p37, %p38
      %p40 = scmp.ne.s32.totalorder %s29, %s30
      %p41 = scmp.eq.s32.totalorder %s21, 0
      %p42 = por %p40, %p41
      %p43 = scmp.ne.s32.totalorder %s29, %s30
      %p44 = scmp.eq.s32.totalorder %s22, 1
      %p45 = por %p43, %p44
      %p47 = scmp.ne.s32.totalorder %s30, %s46
      %p48 = scmp.eq.s32.totalorder %s22, 0
      %p49 = por %p47, %p48
      %s51 = sadd.s32 %s50, 1
      %p54 = scmp.eq.s32.totalorder %s16, 1
      %p55 = scmp.ne.s32.totalorder %s50, %s52
      %p56 = scmp.eq.s32.totalorder %s16, 0
      %p57 = por %p55, %p56
      %p58 = scmp.ne.s32.totalorder %s50, %s52
      %p59 = scmp.eq.s32.totalorder %s21, 1
      %p60 = por %p58, %p59
      %p61 = scmp.ne.s32.totalorder %s52, %s53
      %p62 = scmp.eq.s32.totalorder %s21, 0
      %p63 = por %p61, %p62
      %p64 = scmp.ne.s32.totalorder %s52, %s53
      %p65 = scmp.eq.s32.totalorder %s22, 1
      %p66 = por %p64, %p65
      %p68 = scmp.ne.s32.totalorder %s53, %s67
      %p69 = scmp.eq.s32.totalorder %s22, 0
      %p70 = por %p68, %p69
      %s72 = sadd.s32 %s71, 1
      %p75 = scmp.eq.s32.totalorder %s16, 1
      %p76 = scmp.ne.s32.totalorder %s71, %s73
      %p77 = scmp.eq.s32.totalorder %s16, 0
      %p78 = por %p76, %p77
      %p79 = scmp.ne.s32.totalorder %s71, %s73
      %p80 = scmp.eq.s32.totalorder %s21, 1
      %p81 = por %p79, %p80
      %p82 = scmp.ne.s32.totalorder %s73, %s74
      %p83 = scmp.eq.s32.totalorder %s21, 0
      %p84 = por %p82, %p83
      %p85 = scmp.ne.s32.totalorder %s73, %s74
      %p86 = scmp.eq.s32.totalorder %s22, 1
      %p87 = por %p85, %p86
      %p89 = scmp.ne.s32.totalorder %s74, %s88
      %p90 = scmp.eq.s32.totalorder %s22, 0
      %p91 = por %p89, %p90
      %s92 = ssub.s32 %s16, %s23
      %p93 = scmp.eq.s32.totalorder %s92, 0
      %s95 = sadd.s32 %s94, 1
      %s96 = scalar_select %p93, %s94, %s95
      %p99 = pneg %p93
      %p100 = scmp.eq.s32.totalorder %s16, 1
      %p101 = por %p99, %p100
      %p102 = scmp.ne.s32.totalorder %s94, %s97
      %p103 = scmp.eq.s32.totalorder %s16, 0
      %p104 = por %p102, %p103
      %p105 = scmp.ne.s32.totalorder %s94, %s97
      %p106 = scmp.eq.s32.totalorder %s21, 1
      %p107 = por %p105, %p106
      %p108 = scmp.ne.s32.totalorder %s97, %s98
      %p109 = scmp.eq.s32.totalorder %s21, 0
      %p110 = por %p108, %p109
      %p111 = scmp.ne.s32.totalorder %s97, %s98
      %p112 = scmp.eq.s32.totalorder %s22, 1
      %p113 = por %p111, %p112
      %p115 = scmp.ne.s32.totalorder %s98, %s114
      %p116 = scmp.eq.s32.totalorder %s22, 0
      %p117 = por %p115, %p116
      %p118 = scmp.le.s32.totalorder 1, %s16
      %p119 = scmp.lt.s32.totalorder %s16, 3
      %p120 = pnand %p118, %p119
      %p121 = pneg %p120
      // Predicated region
      $region9: #{tpu_custom_call.1} parent=5 // pred_check
        _
      $region10: #{tpu_custom_call.1} parent=5 // pred_check_branch
        %123 = sbr.rel (%p120) target = $region12
      $region11: #{tpu_custom_call.1} parent=5 // pred_region
        %s124 = ssub.s32 %s16, 1
        // Predicated region
        $region13: #{tpu_custom_call.1} parent=11 // pred_check
          %p125 = pneg %p63
        $region14: #{tpu_custom_call.1} parent=11 // pred_check_branch
          %127 = sbr.rel (%p125) target = $region16
        $region15: #{tpu_custom_call.1} parent=11 // pred_region
          %129 = vsyncadd [#allocation6], 0
          %s130 = sshll.u32 %s1, 4
          %s131 = int_to_ptr.hbm [resolvable:$true] %s130
          %s132 = sshll.u32 [#allocation5], 4
          %s133 = int_to_ptr.vmem [resolvable:$true] %s132
          %138 = dma.hbm_to_vmem [thread:$0]  %s131, 8192, %s133, [#allocation6], 256, 256, 16
        $region16: #{tpu_custom_call.1} parent=11 // pred_fallthru
          _
        // Predicated region
        $region17: #{tpu_custom_call.1} parent=11 // pred_check
          %p139 = pneg %p84
        $region18: #{tpu_custom_call.1} parent=11 // pred_check_branch
          %141 = sbr.rel (%p139) target = $region20
        $region19: #{tpu_custom_call.1} parent=11 // pred_region
          %143 = vsyncadd [#allocation6], 0
          %s145 = sshll.u32 %s2, 4
          %s146 = int_to_ptr.hbm [resolvable:$true] %s145
          %s147 = sshll.u32 [#allocation7], 4
          %s148 = int_to_ptr.vmem [resolvable:$true] %s147
          %150 = dma.hbm_to_vmem [thread:$0]  %s146, 32, %s148, [#allocation6]
        $region20: #{tpu_custom_call.1} parent=11 // pred_fallthru
          _
      $region12: #{tpu_custom_call.1} parent=5 // pred_fallthru
        _
      %p151 = scmp.lt.s32.totalorder %s16, 2
      // Predicated region
      $region21: #{tpu_custom_call.1} parent=5 // pred_check
        %p152 = pneg %p151
      $region22: #{tpu_custom_call.1} parent=5 // pred_check_branch
        %154 = sbr.rel (%p152) target = $region24
      $region23: #{tpu_custom_call.1} parent=5 // pred_region
        // Predicated region
        $region25: #{tpu_custom_call.1} parent=23 // pred_check
          %p155 = pneg %p36
        $region26: #{tpu_custom_call.1} parent=23 // pred_check_branch
          %157 = sbr.rel (%p155) target = $region28
        $region27: #{tpu_custom_call.1} parent=23 // pred_region
          %s158 = sand.u32 %s26, 1
          %s159 = scalar_lea.sflag [#allocation3], %s158
          %s160 = sand.u32 %s26, 1
          %s161 = smul.addr %s160, 64
          %s162 = scalar_lea.vmem [#allocation2], %s161
          %s163 = smul.u32 4, %s16
          %165 = vsyncadd %s159, 0
          %s166 = smul.addr %s163, 2
          %s167 = smul.addr %s166, 8
          %s168 = scalar_lea.hbm %s0, %s167
          %s169 = sshll.u32 %s168, 4
          %s170 = int_to_ptr.hbm [resolvable:$true] %s169
          %s171 = sshll.u32 %s162, 4
          %s172 = int_to_ptr.vmem [resolvable:$true] %s171
          %177 = dma.hbm_to_vmem [thread:$0]  %s170, 1024, %s172, %s159, 256, 256, 16
        $region28: #{tpu_custom_call.1} parent=23 // pred_fallthru
          _
      $region24: #{tpu_custom_call.1} parent=5 // pred_fallthru
        _
      %p178 = scmp.le.s32.totalorder 1, %s16
      %p179 = scmp.lt.s32.totalorder %s16, 3
      %p180 = pnand %p178, %p179
      %p181 = pneg %p180
      // Predicated region
      $region29: #{tpu_custom_call.1} parent=5 // pred_check
        _
      $region30: #{tpu_custom_call.1} parent=5 // pred_check_branch
        %183 = sbr.rel (%p180) target = $region32
      $region31: #{tpu_custom_call.1} parent=5 // pred_region
        %s184 = ssub.s32 %s16, 1
        %s185 = sand.u32 %s29, 1
        %s186 = scalar_lea.sflag [#allocation3], %s185
        %s187 = sand.u32 %s29, 1
        %s188 = smul.addr %s187, 64
        %s189 = scalar_lea.vmem [#allocation2], %s188
        // Predicated region
        $region33: #{tpu_custom_call.1} parent=31 // pred_check
          %p190 = pneg %p42
        $region34: #{tpu_custom_call.1} parent=31 // pred_check_branch
          %192 = sbr.rel (%p190) target = $region36
        $region35: #{tpu_custom_call.1} parent=31 // pred_region
          %194 = dma.done %s186, 1024
        $region36: #{tpu_custom_call.1} parent=31 // pred_fallthru
          _
        // Predicated region
        $region37: #{tpu_custom_call.1} parent=31 // pred_check
          %p195 = pneg %p63
        $region38: #{tpu_custom_call.1} parent=31 // pred_check_branch
          %197 = sbr.rel (%p195) target = $region40
        $region39: #{tpu_custom_call.1} parent=31 // pred_region
          %199 = dma.done [#allocation6], 8192
        $region40: #{tpu_custom_call.1} parent=31 // pred_fallthru
          _
        // Predicated region
        $region41: #{tpu_custom_call.1} parent=31 // pred_check
          %p200 = pneg %p84
        $region42: #{tpu_custom_call.1} parent=31 // pred_check_branch
          %202 = sbr.rel (%p200) target = $region44
        $region43: #{tpu_custom_call.1} parent=31 // pred_region
          %204 = dma.done [#allocation6], 32
        $region44: #{tpu_custom_call.1} parent=31 // pred_fallthru
          _
        %s205 = sand.u32 %s29, 1
        %s206 = scalar_lea.sflag [#allocation3], %s205
        %s207 = sand.u32 %s29, 1
        %s208 = smul.addr %s207, 64
        %s209 = scalar_lea.vmem [#allocation2], %s208
        %p210 = pneg %p42
        %p211 = pneg %p39
        %p212 = pneg %p63
        %p213 = pneg %p60
        %p214 = pneg %p84
        %p215 = pneg %p81
        %p216 = pneg %p110
        %p217 = pneg %p107
        %s218 = sand.u32 %s97, 1
        %s219 = scalar_lea.sflag [#allocation4], %s218
        %s220 = sand.u32 %s97, 1
        %s221 = smul.addr %s220, 64
        %s222 = scalar_lea.vmem [#allocation8], %s221
        %s223 = smul.u32 4, %s21
        %s224 = smul.u32 4, %s21
        %v225 = vld [vmem:[%s189] sm:$0xff]
        %v226 = vld [vmem:[%s189 + $0x8] sm:$0xff]
        %v227 = vld [vmem:[%s189 + $0x10] sm:$0xff]
        %v228 = vld [vmem:[%s189 + $0x18] sm:$0xff]
        %v229 = vld [vmem:[%s189 + $0x20] sm:$0xff]
        %v230 = vld [vmem:[%s189 + $0x28] sm:$0xff]
        %v231 = vld [vmem:[%s189 + $0x30] sm:$0xff]
        %v232 = vld [vmem:[%s189 + $0x38] sm:$0xff]
        %v233 = vld [vmem:[#allocation5] sm:$0xff]
        %v234 = vld [vmem:[#allocation5 + $0x8] sm:$0xff]
        %v235 = vld [vmem:[#allocation5 + $0x10] sm:$0xff]
        %v236 = vld [vmem:[#allocation5 + $0x18] sm:$0xff]
        %v237 = vld [vmem:[#allocation5 + $0x20] sm:$0xff]
        %v238 = vld [vmem:[#allocation5 + $0x28] sm:$0xff]
        %v239 = vld [vmem:[#allocation5 + $0x30] sm:$0xff]
        %v240 = vld [vmem:[#allocation5 + $0x38] sm:$0xff]
        %v241 = vld [vmem:[#allocation5 + $0x40] sm:$0xff]
        %v242 = vld [vmem:[#allocation5 + $0x48] sm:$0xff]
        %v243 = vld [vmem:[#allocation5 + $0x50] sm:$0xff]
        %v244 = vld [vmem:[#allocation5 + $0x58] sm:$0xff]
        %v245 = vld [vmem:[#allocation5 + $0x60] sm:$0xff]
        %v246 = vld [vmem:[#allocation5 + $0x68] sm:$0xff]
        %v247 = vld [vmem:[#allocation5 + $0x70] sm:$0xff]
        %v248 = vld [vmem:[#allocation5 + $0x78] sm:$0xff]
        %v249 = vld [vmem:[#allocation5 + $0x80] sm:$0xff]
        %v250 = vld [vmem:[#allocation5 + $0x88] sm:$0xff]
        %v251 = vld [vmem:[#allocation5 + $0x90] sm:$0xff]
        %v252 = vld [vmem:[#allocation5 + $0x98] sm:$0xff]
        %v253 = vld [vmem:[#allocation5 + $0xa0] sm:$0xff]
        %v254 = vld [vmem:[#allocation5 + $0xa8] sm:$0xff]
        %v255 = vld [vmem:[#allocation5 + $0xb0] sm:$0xff]
        %v256 = vld [vmem:[#allocation5 + $0xb8] sm:$0xff]
        %v257 = vld [vmem:[#allocation5 + $0xc0] sm:$0xff]
        %v258 = vld [vmem:[#allocation5 + $0xc8] sm:$0xff]
        %v259 = vld [vmem:[#allocation5 + $0xd0] sm:$0xff]
        %v260 = vld [vmem:[#allocation5 + $0xd8] sm:$0xff]
        %v261 = vld [vmem:[#allocation5 + $0xe0] sm:$0xff]
        %v262 = vld [vmem:[#allocation5 + $0xe8] sm:$0xff]
        %v263 = vld [vmem:[#allocation5 + $0xf0] sm:$0xff]
        %v264 = vld [vmem:[#allocation5 + $0xf8] sm:$0xff]
        %v265 = vld [vmem:[#allocation5 + $0x100] sm:$0xff]
        %v266 = vld [vmem:[#allocation5 + $0x108] sm:$0xff]
        %v267 = vld [vmem:[#allocation5 + $0x110] sm:$0xff]
        %v268 = vld [vmem:[#allocation5 + $0x118] sm:$0xff]
        %v269 = vld [vmem:[#allocation5 + $0x120] sm:$0xff]
        %v270 = vld [vmem:[#allocation5 + $0x128] sm:$0xff]
        %v271 = vld [vmem:[#allocation5 + $0x130] sm:$0xff]
        %v272 = vld [vmem:[#allocation5 + $0x138] sm:$0xff]
        %v273 = vld [vmem:[#allocation5 + $0x140] sm:$0xff]
        %v274 = vld [vmem:[#allocation5 + $0x148] sm:$0xff]
        %v275 = vld [vmem:[#allocation5 + $0x150] sm:$0xff]
        %v276 = vld [vmem:[#allocation5 + $0x158] sm:$0xff]
        %v277 = vld [vmem:[#allocation5 + $0x160] sm:$0xff]
        %v278 = vld [vmem:[#allocation5 + $0x168] sm:$0xff]
        %v279 = vld [vmem:[#allocation5 + $0x170] sm:$0xff]
        %v280 = vld [vmem:[#allocation5 + $0x178] sm:$0xff]
        %v281 = vld [vmem:[#allocation5 + $0x180] sm:$0xff]
        %v282 = vld [vmem:[#allocation5 + $0x188] sm:$0xff]
        %v283 = vld [vmem:[#allocation5 + $0x190] sm:$0xff]
        %v284 = vld [vmem:[#allocation5 + $0x198] sm:$0xff]
        %v285 = vld [vmem:[#allocation5 + $0x1a0] sm:$0xff]
        %v286 = vld [vmem:[#allocation5 + $0x1a8] sm:$0xff]
        %v287 = vld [vmem:[#allocation5 + $0x1b0] sm:$0xff]
        %v288 = vld [vmem:[#allocation5 + $0x1b8] sm:$0xff]
        %v289 = vld [vmem:[#allocation5 + $0x1c0] sm:$0xff]
        %v290 = vld [vmem:[#allocation5 + $0x1c8] sm:$0xff]
        %v291 = vld [vmem:[#allocation5 + $0x1d0] sm:$0xff]
        %v292 = vld [vmem:[#allocation5 + $0x1d8] sm:$0xff]
        %v293 = vld [vmem:[#allocation5 + $0x1e0] sm:$0xff]
        %v294 = vld [vmem:[#allocation5 + $0x1e8] sm:$0xff]
        %v295 = vld [vmem:[#allocation5 + $0x1f0] sm:$0xff]
        %v296 = vld [vmem:[#allocation5 + $0x1f8] sm:$0xff]
        %v297 = vld [vmem:[#allocation7] sm:$0x3]
        %v299 = vperm.slane %v297, 0
        %v300 = vperm.slane %v297, 1
        %303 = vmatpush.msra.mxu0 %v263
        %304 = vmatpush.msra.mxu0 %v261
        %305 = vmatpush.msra.mxu0 %v259
        %306 = vmatpush.msra.mxu0 %v257
        %307 = vmatpush.msra.mxu0 %v255
        %308 = vmatpush.msra.mxu0 %v253
        %309 = vmatpush.msra.mxu0 %v251
        %310 = vmatpush.msra.mxu0 %v249
        %311 = vmatpush.msra.mxu0 %v247
        %312 = vmatpush.msra.mxu0 %v245
        %313 = vmatpush.msra.mxu0 %v243
        %314 = vmatpush.msra.mxu0 %v241
        %315 = vmatpush.msra.mxu0 %v239
        %316 = vmatpush.msra.mxu0 %v237
        %317 = vmatpush.msra.mxu0 %v235
        %318 = vmatpush.msra.mxu0 %v233
        %319 = vmatmul.f32.gmra.mxu0 %v225
        %v320 = vpop.f32.mrf.mxu0
        %v321 = vadd.f32 %v299, %v320
        %322 = vmatmul.f32.gmra.mxu0 %v227
        %v323 = vpop.f32.mrf.mxu0
        %v324 = vadd.f32 %v299, %v323
        %325 = vmatmul.f32.gmra.mxu0 %v229
        %v326 = vpop.f32.mrf.mxu0
        %v327 = vadd.f32 %v299, %v326
        %328 = vmatmul.f32.gmra.mxu0 %v231
        %v329 = vpop.f32.mrf.mxu0
        %v330 = vadd.f32 %v299, %v329
        %331 = vdwg.mxu0
        %332 = vmatpush.msra.mxu0 %v295
        %333 = vmatpush.msra.mxu0 %v293
        %334 = vmatpush.msra.mxu0 %v291
        %335 = vmatpush.msra.mxu0 %v289
        %336 = vmatpush.msra.mxu0 %v287
        %337 = vmatpush.msra.mxu0 %v285
        %338 = vmatpush.msra.mxu0 %v283
        %339 = vmatpush.msra.mxu0 %v281
        %340 = vmatpush.msra.mxu0 %v279
        %341 = vmatpush.msra.mxu0 %v277
        %342 = vmatpush.msra.mxu0 %v275
        %343 = vmatpush.msra.mxu0 %v273
        %344 = vmatpush.msra.mxu0 %v271
        %345 = vmatpush.msra.mxu0 %v269
        %346 = vmatpush.msra.mxu0 %v267
        %347 = vmatpush.msra.mxu0 %v265
        %348 = vmatmul.f32.gmra.mxu0 %v226
        %v349 = vpop.f32.mrf.mxu0
        %v350 = vadd.f32 %v321, %v349
        %351 = vmatmul.f32.gmra.mxu0 %v228
        %v352 = vpop.f32.mrf.mxu0
        %v353 = vadd.f32 %v324, %v352
        %354 = vmatmul.f32.gmra.mxu0 %v230
        %v355 = vpop.f32.mrf.mxu0
        %v356 = vadd.f32 %v327, %v355
        %357 = vmatmul.f32.gmra.mxu0 %v232
        %v358 = vpop.f32.mrf.mxu0
        %v359 = vadd.f32 %v330, %v358
        %360 = vdwg.mxu0
        %361 = vmatpush.msra.mxu0 %v264
        %362 = vmatpush.msra.mxu0 %v262
        %363 = vmatpush.msra.mxu0 %v260
        %364 = vmatpush.msra.mxu0 %v258
        %365 = vmatpush.msra.mxu0 %v256
        %366 = vmatpush.msra.mxu0 %v254
        %367 = vmatpush.msra.mxu0 %v252
        %368 = vmatpush.msra.mxu0 %v250
        %369 = vmatpush.msra.mxu0 %v248
        %370 = vmatpush.msra.mxu0 %v246
        %371 = vmatpush.msra.mxu0 %v244
        %372 = vmatpush.msra.mxu0 %v242
        %373 = vmatpush.msra.mxu0 %v240
        %374 = vmatpush.msra.mxu0 %v238
        %375 = vmatpush.msra.mxu0 %v236
        %376 = vmatpush.msra.mxu0 %v234
        %377 = vmatmul.f32.gmra.mxu0 %v225
        %v378 = vpop.f32.mrf.mxu0
        %v379 = vadd.f32 %v300, %v378
        %380 = vmatmul.f32.gmra.mxu0 %v227
        %v381 = vpop.f32.mrf.mxu0
        %v382 = vadd.f32 %v300, %v381
        %383 = vmatmul.f32.gmra.mxu0 %v229
        %v384 = vpop.f32.mrf.mxu0
        %v385 = vadd.f32 %v300, %v384
        %386 = vmatmul.f32.gmra.mxu0 %v231
        %v387 = vpop.f32.mrf.mxu0
        %v388 = vadd.f32 %v300, %v387
        %389 = vdwg.mxu0
        %390 = vmatpush.msra.mxu0 %v296
        %391 = vmatpush.msra.mxu0 %v294
        %392 = vmatpush.msra.mxu0 %v292
        %393 = vmatpush.msra.mxu0 %v290
        %394 = vmatpush.msra.mxu0 %v288
        %395 = vmatpush.msra.mxu0 %v286
        %396 = vmatpush.msra.mxu0 %v284
        %397 = vmatpush.msra.mxu0 %v282
        %398 = vmatpush.msra.mxu0 %v280
        %399 = vmatpush.msra.mxu0 %v278
        %400 = vmatpush.msra.mxu0 %v276
        %401 = vmatpush.msra.mxu0 %v274
        %402 = vmatpush.msra.mxu0 %v272
        %403 = vmatpush.msra.mxu0 %v270
        %404 = vmatpush.msra.mxu0 %v268
        %405 = vmatpush.msra.mxu0 %v266
        %406 = vmatmul.f32.gmra.mxu0 %v226
        %v407 = vpop.f32.mrf.mxu0
        %v408 = vadd.f32 %v379, %v407
        %409 = vmatmul.f32.gmra.mxu0 %v228
        %v410 = vpop.f32.mrf.mxu0
        %v411 = vadd.f32 %v382, %v410
        %412 = vmatmul.f32.gmra.mxu0 %v230
        %v413 = vpop.f32.mrf.mxu0
        %v414 = vadd.f32 %v385, %v413
        %415 = vmatmul.f32.gmra.mxu0 %v232
        %v416 = vpop.f32.mrf.mxu0
        %v417 = vadd.f32 %v388, %v416
        %418 = vdwg.mxu0
        %v419 = vmax.f32 %v350, 0.0
        %v420 = vmax.f32 %v408, 0.0
        %v421 = vmax.f32 %v353, 0.0
        %v422 = vmax.f32 %v411, 0.0
        %v423 = vmax.f32 %v356, 0.0
        %v424 = vmax.f32 %v414, 0.0
        %v425 = vmax.f32 %v359, 0.0
        %v426 = vmax.f32 %v417, 0.0
        %427 = vst [vmem:[%s222] sm:$0xff] %v419
        %428 = vst [vmem:[%s222 + $0x8] sm:$0xff] %v420
        %429 = vst [vmem:[%s222 + $0x10] sm:$0xff] %v421
        %430 = vst [vmem:[%s222 + $0x18] sm:$0xff] %v422
        %431 = vst [vmem:[%s222 + $0x20] sm:$0xff] %v423
        %432 = vst [vmem:[%s222 + $0x28] sm:$0xff] %v424
        %433 = vst [vmem:[%s222 + $0x30] sm:$0xff] %v425
        %434 = vst [vmem:[%s222 + $0x38] sm:$0xff] %v426
        %s435 = sand.u32 %s97, 1
        %s436 = scalar_lea.sflag [#allocation4], %s435
        %s437 = sand.u32 %s97, 1
        %s438 = smul.addr %s437, 64
        %s439 = scalar_lea.vmem [#allocation8], %s438
        // Predicated region
        $region45: #{tpu_custom_call.1} parent=31 // pred_check
          %p440 = pneg %p107
        $region46: #{tpu_custom_call.1} parent=31 // pred_check_branch
          %442 = sbr.rel (%p440) target = $region48
        $region47: #{tpu_custom_call.1} parent=31 // pred_region
          %s443 = smul.u32 4, %s21
          %445 = vsyncadd %s436, 0
          %s446 = smul.addr %s443, 2
          %s447 = smul.addr %s446, 8
          %s448 = scalar_lea.hbm %s3, %s447
          %s449 = sshll.u32 %s439, 4
          %s450 = int_to_ptr.vmem [resolvable:$true] %s449
          %s451 = sshll.u32 %s448, 4
          %s452 = int_to_ptr.hbm [resolvable:$true] %s451
          %457 = dma.vmem_to_hbm [thread:$0]  %s450, 1024, %s452, %s436, 256, 256, 16
        $region48: #{tpu_custom_call.1} parent=31 // pred_fallthru
          _
      $region32: #{tpu_custom_call.1} parent=5 // pred_fallthru
        _
      %p458 = scmp.le.s32.totalorder 2, %s16
      // Predicated region
      $region49: #{tpu_custom_call.1} parent=5 // pred_check
        %p459 = pneg %p458
      $region50: #{tpu_custom_call.1} parent=5 // pred_check_branch
        %461 = sbr.rel (%p459) target = $region52
      $region51: #{tpu_custom_call.1} parent=5 // pred_region
        %s462 = ssub.s32 %s16, 2
        // Predicated region
        $region53: #{tpu_custom_call.1} parent=51 // pred_check
          %p463 = pneg %p113
        $region54: #{tpu_custom_call.1} parent=51 // pred_check_branch
          %465 = sbr.rel (%p463) target = $region56
        $region55: #{tpu_custom_call.1} parent=51 // pred_region
          %s466 = sand.u32 %s98, 1
          %s467 = scalar_lea.sflag [#allocation4], %s466
          %s468 = sand.u32 %s98, 1
          %s469 = smul.addr %s468, 64
          %s470 = scalar_lea.vmem [#allocation8], %s469
          %472 = dma.done %s467, 1024
        $region56: #{tpu_custom_call.1} parent=51 // pred_fallthru
          _
      $region52: #{tpu_custom_call.1} parent=5 // pred_fallthru
        _
    $region6: #{tpu_custom_call.1} parent=1 // loop_footer
      %s20 = sadd.s32 1, %s16
    $region7: #{tpu_custom_call.1} parent=1 // loop_footer_branch
      %15 = sbr.rel target = $region3
    $region8: #{tpu_custom_call.1} parent=1 // loop_exit
      _
    %473 = vsyncpa [#allocation3], 1
    %s474 = scalar_lea.sflag [#allocation3], 1
    %475 = vsyncpa %s474, 1
    %476 = vsyncpa [#allocation6], 1
    %477 = vsyncpa [#allocation4], 1
    %s478 = scalar_lea.sflag [#allocation4], 1
    %479 = vsyncpa %s478, 1

</llo_original>
